<compile_context>
chip_gen: v6e
topology: v6e:2x2x1
jax: 0.10.0
libtpu: 0.0.40
codegen_flags: <defaults>
</compile_context>

<pallas_src>
import math
import functools

import jax
import jax.numpy as jnp
from jax.experimental import pallas as pl
from jax.experimental.pallas import tpu as pltpu

LANE = 128  # TPU lane width; final layer is padded to this for lane-dense stores.


def actor_kernel(x_ref, w1_ref, b1_ref, w2_ref, b2_ref, w3_ref, b3_ref, o_ref):
    # fc1 + relu: keep the LHS (raw observations) in f32; K is tiny so the
    # multi-pass f32 MXU matmul is negligible.
    x = x_ref[...]
    h1 = jnp.dot(x, w1_ref[...].astype(jnp.float32),
                 preferred_element_type=jnp.float32)
    h1 = jnp.maximum(h1 + b1_ref[...], 0.0)
    # fc2 + relu  (bf16 x bf16 -> f32 accumulate on the MXU)
    h2 = jnp.dot(h1.astype(jnp.bfloat16), w2_ref[...],
                 preferred_element_type=jnp.float32)
    h2 = jnp.maximum(h2 + b2_ref[...], 0.0)
    # output (lane-padded to 128) + tanh  (tanh -> EUP slot, off the MXU path)
    out = jnp.dot(h2.astype(jnp.bfloat16), w3_ref[...],
                  preferred_element_type=jnp.float32)
    o_ref[...] = jnp.tanh(out + b3_ref[...]).astype(o_ref.dtype)


def _choose_block(B, block_b):
    """Pick the batch tile: small-B path uses a single snug tile; large-B path
    caps the tile so grid >= 2 (keeps both v7x TensorCores busy)."""
    block = max(8, min(block_b, ((B + 7) // 8) * 8))
    if B > 256 and pl.cdiv(B, block) < 2:
        block = max(256, ((pl.cdiv(B, 2) + 7) // 8) * 8)
    return block


@functools.partial(jax.jit, static_argnames=("n_actions", "block_b"))
def _actor_forward_impl(state, w1, b1, w2, b2, w3p, b3p, *, n_actions, block_b):
    B, in_dims = state.shape
    fc1 = w1.shape[1]
    fc2 = w2.shape[1]
    out_pad = w3p.shape[1]

    block = _choose_block(B, block_b)
    grid = (pl.cdiv(B, block),)

    # Advisory cost estimate for XLA's scheduler around the custom call.
    flops = 2 * B * (in_dims * fc1 + fc1 * fc2 + fc2 * out_pad)
    bytes_accessed = (
        B * in_dims * 4                        # state in (f32)
        + (w1.size + w2.size + w3p.size) * 2   # bf16 weights
        + (b1.size + b2.size + b3p.size) * 4   # f32 biases
        + B * out_pad * 2                      # bf16 padded output
    )
    cost = pl.CostEstimate(flops=flops, transcendentals=B * out_pad,
                           bytes_accessed=bytes_accessed)

    # Weights/biases: constant index_map -> DMA'd once, VMEM-resident.
    resident = lambda a: pl.BlockSpec(a.shape, lambda i: (0, 0))

    out = pl.pallas_call(
        actor_kernel,
        out_shape=jax.ShapeDtypeStruct((B, out_pad), jnp.bfloat16),
        grid=grid,
        in_specs=[
            pl.BlockSpec((block, in_dims), lambda i: (i, 0)),   # streamed state tiles
            resident(w1), resident(b1),
            resident(w2), resident(b2),
            resident(w3p), resident(b3p),
        ],
        out_specs=pl.BlockSpec((block, out_pad), lambda i: (i, 0)),
        compiler_params=pltpu.CompilerParams(
            dimension_semantics=("parallel",)),                 # megacore on v7x
        cost_estimate=cost,
    )(state, w1, b1, w2, b2, w3p, b3p)

    # Strip the lane padding of the last layer; upcast the tiny result to f32.
    return out[:, :n_actions].astype(jnp.float32)


def actor_forward(state, params, *, block_b=512):
    """state: [B, input_dims] f32; params from init_params(). Returns [B, n_actions] f32.

    block_b: batch tile upper bound (MXU M dimension). Default 512 amortizes the
    ~0.35us per-grid-step overhead; sweep 512/1024/2048 for training-sized batches.
    """
    return _actor_forward_impl(
        state,
        params["w1"], params["b1"],
        params["w2"], params["b2"],
        params["w3_padded"], params["b3_padded"],
        n_actions=params["n_actions"],          # plain Python int -> static slice bound
        block_b=block_b,
    )


def init_params(key, input_dims, fc1_dims=256, fc2_dims=128, n_actions=2):
    """PyTorch nn.Linear default init (U[-1/sqrt(fan_in), +]); weights stored bf16,
    final layer zero-padded to 128 output lanes for lane-dense stores."""
    ks = jax.random.split(key, 6)

    def linear(kw, kb, fan_in, fan_out):
        bound = 1.0 / math.sqrt(fan_in)
        w = jax.random.uniform(kw, (fan_in, fan_out), jnp.float32, -bound, bound)
        b = jax.random.uniform(kb, (1, fan_out), jnp.float32, -bound, bound)
        return w, b

    w1, b1 = linear(ks[0], ks[1], input_dims, fc1_dims)
    w2, b2 = linear(ks[2], ks[3], fc1_dims, fc2_dims)
    w3, b3 = linear(ks[4], ks[5], fc2_dims, n_actions)

    out_pad = max(LANE, pl.cdiv(n_actions, LANE) * LANE)
    w3_padded = jnp.zeros((fc2_dims, out_pad), jnp.float32).at[:, :n_actions].set(w3)
    b3_padded = jnp.zeros((1, out_pad), jnp.float32).at[:, :n_actions].set(b3)

    return {
        # bf16 weights (halved DMA, native MXU dtype); f32 biases.
        "w1": w1.astype(jnp.bfloat16), "b1": b1,
        "w2": w2.astype(jnp.bfloat16), "b2": b2,
        "w3_padded": w3_padded.astype(jnp.bfloat16), "b3_padded": b3_padded,
        "n_actions": int(n_actions),            # static metadata (not traced)
        # f32 originals kept for reference validation only.
        "_w1_f32": w1, "_w2_f32": w2, "_w3_f32": w3, "_b3_f32": b3,
    }


def _reference_mixed(state, params):
    """Pure-JAX replica of the kernel's numerics (f32 fc1, bf16 fc2/out, bf16 store)."""
    n_actions = params["n_actions"]
    h1 = jnp.maximum(
        jnp.dot(state, params["w1"].astype(jnp.float32),
                preferred_element_type=jnp.float32) + params["b1"], 0.0)
    h2 = jnp.maximum(
        jnp.dot(h1.astype(jnp.bfloat16), params["w2"],
                preferred_element_type=jnp.float32) + params["b2"], 0.0)
    out = jnp.tanh(
        jnp.dot(h2.astype(jnp.bfloat16), params["w3_padded"],
                preferred_element_type=jnp.float32) + params["b3_padded"])
    return out.astype(jnp.bfloat16)[:, :n_actions].astype(jnp.float32)


def _reference_f32(state, params):
    """Full-f32 PyTorch-semantics reference (sanity check on bf16 error)."""
    h1 = jnp.maximum(state @ params["_w1_f32"] + params["b1"], 0.0)
    h2 = jnp.maximum(h1 @ params["_w2_f32"] + params["b2"], 0.0)
    return jnp.tanh(h2 @ params["_w3_f32"] + params["_b3_f32"])


if __name__ == "__main__":
    key = jax.random.PRNGKey(0)
    k_state, k_params = jax.random.split(key)

    batch, input_dims, n_actions = 8, 16, 2
    state = jax.random.normal(k_state, (batch, input_dims), dtype=jnp.float32)
    params = init_params(k_params, input_dims, fc1_dims=256, fc2_dims=128,
                         n_actions=n_actions)

    out = actor_forward(state, params)
    out = jax.block_until_ready(out)
    assert out.shape == (batch, n_actions)

    # Matching-numerics reference (same mixed-precision path as the kernel).
    ref_mixed = _reference_mixed(state, params)
    assert jnp.allclose(out, ref_mixed, atol=1e-2), "mismatch vs mixed-precision reference"

    # Looser check against the pure-f32 PyTorch-semantics path.
    ref_f32 = _reference_f32(state, params)
    assert jnp.allclose(out, ref_f32, atol=2e-2), "mismatch vs f32 reference"

    print("KERNEL_OK")
</pallas_src>

<mosaic_0001>
module attributes {stable_mosaic.version = 11 : i64} {
  func.func @actor_kernel(%arg0: i32, %arg1: memref<8x16xf32, #tpu.memory_space<vmem>>, %arg2: memref<16x256xbf16, #tpu.memory_space<vmem>>, %arg3: memref<1x256xf32, #tpu.memory_space<vmem>>, %arg4: memref<256x128xbf16, #tpu.memory_space<vmem>>, %arg5: memref<1x128xf32, #tpu.memory_space<vmem>>, %arg6: memref<128x128xbf16, #tpu.memory_space<vmem>>, %arg7: memref<1x128xf32, #tpu.memory_space<vmem>>, %arg8: memref<8x128xbf16, #tpu.memory_space<vmem>>) attributes {dimension_semantics = [#tpu.dimension_semantics<parallel>], iteration_bounds = array<i64: 1>, scalar_prefetch = 0 : i64, scratch_operands = 0 : i64, tpu.core_type = #tpu.core_type<tc>, window_params = [{transform_indices = @transform_0, window_bounds = array<i64: 8, 16>}, {pipeline_mode = #tpu.pipeline_mode<synchronous>, transform_indices = @transform_1, window_bounds = array<i64: 16, 256>}, {pipeline_mode = #tpu.pipeline_mode<synchronous>, transform_indices = @transform_2, window_bounds = array<i64: 1, 256>}, {pipeline_mode = #tpu.pipeline_mode<synchronous>, transform_indices = @transform_3, window_bounds = array<i64: 256, 128>}, {pipeline_mode = #tpu.pipeline_mode<synchronous>, transform_indices = @transform_4, window_bounds = array<i64: 1, 128>}, {pipeline_mode = #tpu.pipeline_mode<synchronous>, transform_indices = @transform_5, window_bounds = array<i64: 128, 128>}, {pipeline_mode = #tpu.pipeline_mode<synchronous>, transform_indices = @transform_6, window_bounds = array<i64: 1, 128>}, {transform_indices = @transform_7, window_bounds = array<i64: 8, 128>}]} {
    %c0 = arith.constant 0 : index
    %c0_0 = arith.constant 0 : index
    %0 = vector.load %arg1[%c0, %c0_0] : memref<8x16xf32, #tpu.memory_space<vmem>>, vector<8x16xf32>
    %c0_1 = arith.constant 0 : index
    %c0_2 = arith.constant 0 : index
    %1 = vector.load %arg2[%c0_1, %c0_2] : memref<16x256xbf16, #tpu.memory_space<vmem>>, vector<16x256xbf16>
    %2 = arith.extf %1 : vector<16x256xbf16> to vector<16x256xf32>
    %cst = arith.constant dense<0.000000e+00> : vector<8x256xf32>
    %3 = tpu.matmul %0, %2, %cst {dimension_numbers = #tpu.dot_dimension_numbers<[1], [0], [0], [1], [0, 0, 1, 1], [], []>} : vector<8x16xf32>, vector<16x256xf32>, vector<8x256xf32> -> vector<8x256xf32>
    %c0_3 = arith.constant 0 : index
    %c0_4 = arith.constant 0 : index
    %4 = vector.load %arg3[%c0_3, %c0_4] : memref<1x256xf32, #tpu.memory_space<vmem>>, vector<1x256xf32>
    %5 = vector.broadcast %4 : vector<1x256xf32> to vector<8x256xf32>
    %6 = arith.addf %3, %5 : vector<8x256xf32>
    %cst_5 = arith.constant 0.000000e+00 : f32
    %7 = vector.broadcast %cst_5 : f32 to vector<8x256xf32>
    %8 = arith.maximumf %6, %7 : vector<8x256xf32>
    %9 = arith.truncf %8 : vector<8x256xf32> to vector<8x256xbf16>
    %c0_6 = arith.constant 0 : index
    %c0_7 = arith.constant 0 : index
    %10 = vector.load %arg4[%c0_6, %c0_7] : memref<256x128xbf16, #tpu.memory_space<vmem>>, vector<256x128xbf16>
    %cst_8 = arith.constant dense<0.000000e+00> : vector<8x128xf32>
    %11 = tpu.matmul %9, %10, %cst_8 {dimension_numbers = #tpu.dot_dimension_numbers<[1], [0], [0], [1], [0, 0, 1, 1], [], []>} : vector<8x256xbf16>, vector<256x128xbf16>, vector<8x128xf32> -> vector<8x128xf32>
    %c0_9 = arith.constant 0 : index
    %c0_10 = arith.constant 0 : index
    %12 = vector.load %arg5[%c0_9, %c0_10] : memref<1x128xf32, #tpu.memory_space<vmem>>, vector<1x128xf32>
    %13 = vector.broadcast %12 : vector<1x128xf32> to vector<8x128xf32>
    %14 = arith.addf %11, %13 : vector<8x128xf32>
    %cst_11 = arith.constant 0.000000e+00 : f32
    %15 = vector.broadcast %cst_11 : f32 to vector<8x128xf32>
    %16 = arith.maximumf %14, %15 : vector<8x128xf32>
    %17 = arith.truncf %16 : vector<8x128xf32> to vector<8x128xbf16>
    %c0_12 = arith.constant 0 : index
    %c0_13 = arith.constant 0 : index
    %18 = vector.load %arg6[%c0_12, %c0_13] : memref<128x128xbf16, #tpu.memory_space<vmem>>, vector<128x128xbf16>
    %cst_14 = arith.constant dense<0.000000e+00> : vector<8x128xf32>
    %19 = tpu.matmul %17, %18, %cst_14 {dimension_numbers = #tpu.dot_dimension_numbers<[1], [0], [0], [1], [0, 0, 1, 1], [], []>} : vector<8x128xbf16>, vector<128x128xbf16>, vector<8x128xf32> -> vector<8x128xf32>
    %c0_15 = arith.constant 0 : index
    %c0_16 = arith.constant 0 : index
    %20 = vector.load %arg7[%c0_15, %c0_16] : memref<1x128xf32, #tpu.memory_space<vmem>>, vector<1x128xf32>
    %21 = vector.broadcast %20 : vector<1x128xf32> to vector<8x128xf32>
    %22 = arith.addf %19, %21 : vector<8x128xf32>
    %23 = math.tanh %22 : vector<8x128xf32>
    %24 = arith.truncf %23 : vector<8x128xf32> to vector<8x128xbf16>
    %c0_17 = arith.constant 0 : index
    %c0_18 = arith.constant 0 : index
    %25 = vector.load %arg8[%c0_17, %c0_18] : memref<8x128xbf16, #tpu.memory_space<vmem>>, vector<8x128xbf16>
    tpu.vector_store %arg8[%c0_17, %c0_18], %24 {strides = array<i32>} : memref<8x128xbf16, #tpu.memory_space<vmem>>, vector<8x128xbf16>,
    return
  }
  func.func @transform_0(%arg0: i32) -> (i32, i32) {
    %c0_i32 = arith.constant 0 : i32
    %c0_i32_0 = arith.constant 0 : i32
    return %arg0, %c0_i32 : i32, i32
  }
  func.func @transform_1(%arg0: i32) -> (i32, i32) {
    %c0_i32 = arith.constant 0 : i32
    %c0_i32_0 = arith.constant 0 : i32
    %c0_i32_1 = arith.constant 0 : i32
    return %c0_i32, %c0_i32_0 : i32, i32
  }
  func.func @transform_2(%arg0: i32) -> (i32, i32) {
    %c0_i32 = arith.constant 0 : i32
    %c0_i32_0 = arith.constant 0 : i32
    %c0_i32_1 = arith.constant 0 : i32
    return %c0_i32, %c0_i32_0 : i32, i32
  }
  func.func @transform_3(%arg0: i32) -> (i32, i32) {
    %c0_i32 = arith.constant 0 : i32
    %c0_i32_0 = arith.constant 0 : i32
    %c0_i32_1 = arith.constant 0 : i32
    return %c0_i32, %c0_i32_0 : i32, i32
  }
  func.func @transform_4(%arg0: i32) -> (i32, i32) {
    %c0_i32 = arith.constant 0 : i32
    %c0_i32_0 = arith.constant 0 : i32
    %c0_i32_1 = arith.constant 0 : i32
    return %c0_i32, %c0_i32_0 : i32, i32
  }
  func.func @transform_5(%arg0: i32) -> (i32, i32) {
    %c0_i32 = arith.constant 0 : i32
    %c0_i32_0 = arith.constant 0 : i32
    %c0_i32_1 = arith.constant 0 : i32
    return %c0_i32, %c0_i32_0 : i32, i32
  }
  func.func @transform_6(%arg0: i32) -> (i32, i32) {
    %c0_i32 = arith.constant 0 : i32
    %c0_i32_0 = arith.constant 0 : i32
    %c0_i32_1 = arith.constant 0 : i32
    return %c0_i32, %c0_i32_0 : i32, i32
  }
  func.func @transform_7(%arg0: i32) -> (i32, i32) {
    %c0_i32 = arith.constant 0 : i32
    %c0_i32_0 = arith.constant 0 : i32
    return %arg0, %c0_i32 : i32, i32
  }
}

</mosaic_0001>

<llo_original>
// kernel: _actor_forward_impl.1
$region0: #{_actor_forward_impl.1}
  #allocation0 [shape = 'u32[]', space=smem, size = 0x4, offset = 0x4, fixed_abs, tag = 'smem constant byte address 0x4 - core index']
  #allocation1 [shape = 'u32[144,128]{1,0:T(1,128)}', space=vmem, size = 0x12000, scoped, tag = 'internal scratch']
  %s0 = inlined_call_operand.hbm [shape: f32[8,16], index: 0, kind: input, shape index: {}]
  %s1 = inlined_call_operand.hbm [shape: bf16[16,256], index: 1, kind: input, shape index: {}]
  %s2 = inlined_call_operand.vmem [shape: f32[1,256], index: 2, kind: input, shape index: {}]
  %s3 = inlined_call_operand.hbm [shape: bf16[256,128], index: 3, kind: input, shape index: {}]
  %s4 = inlined_call_operand.vmem [shape: f32[1,128], index: 4, kind: input, shape index: {}]
  %s5 = inlined_call_operand.hbm [shape: bf16[128,128], index: 5, kind: input, shape index: {}]
  %s6 = inlined_call_operand.vmem [shape: f32[1,128], index: 6, kind: input, shape index: {}]
  %s7 = inlined_call_operand.vmem [shape: bf16[8,128], index: 7, kind: output, shape index: {}]
  %s8 = sld [smem:[#allocation0]]
  $region54: #{_actor_forward_impl.1} parent=0
    _
  %s10 = ssub.s32 1, %s8
  %s11 = scalar_select 0, %s10, %s8
  $region1: #{_actor_forward_impl.1} parent=0
    #allocation2 [shape = 'u8[4096]{0}', space=vmem, size = 0x1000, scoped, tag = 'input window, operand 0, single buffered']
    #allocation3 [shape = 's32[1]{0}', space=sflag, size = 0x4, scoped, tag = 'scoped memory for _actor_forward_impl.1']
    #allocation4 [shape = 'u8[8192]{0}', space=vmem, size = 0x2000, scoped, tag = 'input window, operand 1, single buffered']
    #allocation5 [shape = 's32[1]{0}', space=sflag, size = 0x4, scoped, tag = 'scoped memory for _actor_forward_impl.1']
    #allocation6 [shape = 'u8[65536]{0}', space=vmem, size = 0x10000, scoped, tag = 'input window, operand 3, single buffered']
    #allocation7 [shape = 'u8[32768]{0}', space=vmem, size = 0x8000, scoped, tag = 'input window, operand 5, single buffered']
    #allocation8 [shape = 's32[1]{0}', space=sflag, size = 0x4, scoped, tag = 'scoped memory for _actor_forward_impl.1']
    %12 = vsyncpa [#allocation3], 0
    %13 = vsyncpa [#allocation5], 0
    %14 = vsyncpa [#allocation8], 0
    // Predicated region
    $region2: #{_actor_forward_impl.1} parent=1 // pred_check
      _
    $region3: #{_actor_forward_impl.1} parent=1 // pred_check_branch
      %16 = sbr.rel (0) target = $region5
    $region4: #{_actor_forward_impl.1} parent=1 // pred_region
      %s18 = ssub.s32 128, 128
      %19 = vsyncadd [#allocation3], %s18
      %s21 = sshll.u32 [#allocation2], 4
      %s22 = int_to_ptr.vmem [resolvable:$true] %s21
      %24 = dma.hbm_to_vmem [thread:$0]  %s0, 128, %s22, [#allocation3]
    $region5: #{_actor_forward_impl.1} parent=1 // pred_fallthru
      _
    // Predicated region
    $region6: #{_actor_forward_impl.1} parent=1 // pred_check
      _
    $region7: #{_actor_forward_impl.1} parent=1 // pred_check_branch
      %26 = sbr.rel (0) target = $region9
    $region8: #{_actor_forward_impl.1} parent=1 // pred_region
      %s28 = ssub.s32 256, 256
      %29 = vsyncadd [#allocation5], %s28
      %s30 = sshll.u32 [#allocation4], 4
      %s31 = int_to_ptr.vmem [resolvable:$true] %s30
      %36 = dma.hbm_to_vmem [thread:$0]  %s1, 256, %s31, [#allocation5], 128, 128, 8
    $region9: #{_actor_forward_impl.1} parent=1 // pred_fallthru
      _
    // Predicated region
    $region10: #{_actor_forward_impl.1} parent=1 // pred_check
      _
    $region11: #{_actor_forward_impl.1} parent=1 // pred_check_branch
      %38 = sbr.rel (0) target = $region13
    $region12: #{_actor_forward_impl.1} parent=1 // pred_region
      _
    $region13: #{_actor_forward_impl.1} parent=1 // pred_fallthru
      _
    // Predicated region
    $region14: #{_actor_forward_impl.1} parent=1 // pred_check
      _
    $region15: #{_actor_forward_impl.1} parent=1 // pred_check_branch
      %40 = sbr.rel (0) target = $region17
    $region16: #{_actor_forward_impl.1} parent=1 // pred_region
      %s42 = ssub.s32 2048, 2048
      %43 = vsyncadd [#allocation5], %s42
      %s44 = sshll.u32 [#allocation6], 4
      %s45 = int_to_ptr.vmem [resolvable:$true] %s44
      %50 = dma.hbm_to_vmem [thread:$0]  %s3, 2048, %s45, [#allocation5], 64, 64, 4
    $region17: #{_actor_forward_impl.1} parent=1 // pred_fallthru
      _
    // Predicated region
    $region18: #{_actor_forward_impl.1} parent=1 // pred_check
      _
    $region19: #{_actor_forward_impl.1} parent=1 // pred_check_branch
      %52 = sbr.rel (0) target = $region21
    $region20: #{_actor_forward_impl.1} parent=1 // pred_region
      _
    $region21: #{_actor_forward_impl.1} parent=1 // pred_fallthru
      _
    // Predicated region
    $region22: #{_actor_forward_impl.1} parent=1 // pred_check
      _
    $region23: #{_actor_forward_impl.1} parent=1 // pred_check_branch
      %54 = sbr.rel (0) target = $region25
    $region24: #{_actor_forward_impl.1} parent=1 // pred_region
      %s56 = ssub.s32 1024, 1024
      %57 = vsyncadd [#allocation8], %s56
      %s58 = sshll.u32 [#allocation7], 4
      %s59 = int_to_ptr.vmem [resolvable:$true] %s58
      %64 = dma.hbm_to_vmem [thread:$0]  %s5, 1024, %s59, [#allocation8], 64, 64, 4
    $region25: #{_actor_forward_impl.1} parent=1 // pred_fallthru
      _
    // Predicated region
    $region26: #{_actor_forward_impl.1} parent=1 // pred_check
      _
    $region27: #{_actor_forward_impl.1} parent=1 // pred_check_branch
      %66 = sbr.rel (0) target = $region29
    $region28: #{_actor_forward_impl.1} parent=1 // pred_region
      _
    $region29: #{_actor_forward_impl.1} parent=1 // pred_fallthru
      _
    // Predicated region
    $region30: #{_actor_forward_impl.1} parent=1 // pred_check
      _
    $region31: #{_actor_forward_impl.1} parent=1 // pred_check_branch
      %68 = sbr.rel (0) target = $region33
    $region32: #{_actor_forward_impl.1} parent=1 // pred_region
      %69 = dma.done [#allocation3], 128
    $region33: #{_actor_forward_impl.1} parent=1 // pred_fallthru
      _
    // Predicated region
    $region34: #{_actor_forward_impl.1} parent=1 // pred_check
      _
    $region35: #{_actor_forward_impl.1} parent=1 // pred_check_branch
      %71 = sbr.rel (0) target = $region37
    $region36: #{_actor_forward_impl.1} parent=1 // pred_region
      %72 = dma.done [#allocation5], 256
    $region37: #{_actor_forward_impl.1} parent=1 // pred_fallthru
      _
    // Predicated region
    $region38: #{_actor_forward_impl.1} parent=1 // pred_check
      _
    $region39: #{_actor_forward_impl.1} parent=1 // pred_check_branch
      %74 = sbr.rel (0) target = $region41
    $region40: #{_actor_forward_impl.1} parent=1 // pred_region
      %75 = dma.done [#allocation5], 2048
    $region41: #{_actor_forward_impl.1} parent=1 // pred_fallthru
      _
    // Predicated region
    $region42: #{_actor_forward_impl.1} parent=1 // pred_check
      _
    $region43: #{_actor_forward_impl.1} parent=1 // pred_check_branch
      %77 = sbr.rel (0) target = $region45
    $region44: #{_actor_forward_impl.1} parent=1 // pred_region
      %78 = dma.done [#allocation8], 1024
    $region45: #{_actor_forward_impl.1} parent=1 // pred_fallthru
      _
    %v80 = vld [vmem:[#allocation2] sm:$0xff]
    %v81 = vld [vmem:[#allocation4] sm:$0xff]
    %v82 = vld [vmem:[#allocation4 + $0x8] sm:$0xff]
    %v83 = vunpack.c.l.bf16 %v81
    %v84 = vunpack.c.h.bf16 %v81
    %v85 = vunpack.c.l.bf16 %v82
    %v86 = vunpack.c.h.bf16 %v82
    %v87 = vld [vmem:[%s2] sm:$0x3]
    %v89 = vlaneseq
    %v90 = vshrl.u32 %v89, 7
    %v91 = vsub.s32 0, %v90
    %v92 = vrot.slane %v87, %v91
    %v93 = vlaneseq
    %v94 = vshrl.u32 %v93, 7
    %v95 = vsub.s32 1, %v94
    %v96 = vrot.slane %v87, %v95
    %vm99 = vcmask 130048
    %v101 = vsel %vm99, %v80, 0
    %103 = vmatprep.subr.mxu0 0.0
    %104 = vmatpush1.msra.mxu0 0.0
    %105 = vmatprep.subr.mxu0 0.0
    %106 = vmatpush1.msra.mxu0 0.0
    %107 = vmatprep.subr.mxu0 0.0
    %108 = vmatpush1.msra.mxu0 0.0
    %109 = vmatprep.subr.mxu0 0.0
    %110 = vmatpush1.msra.mxu0 0.0
    %111 = vmatprep.subr.mxu0 0.0
    %112 = vmatpush1.msra.mxu0 0.0
    %113 = vmatprep.subr.mxu0 0.0
    %114 = vmatpush1.msra.mxu0 0.0
    %115 = vmatprep.subr.mxu0 0.0
    %116 = vmatpush1.msra.mxu0 0.0
    %117 = vmatprep.subr.mxu0 0.0
    %118 = vmatpush1.msra.mxu0 0.0
    %119 = vmatprep.subr.mxu0 0.0
    %120 = vmatpush1.msra.mxu0 0.0
    %121 = vmatprep.subr.mxu0 0.0
    %122 = vmatpush1.msra.mxu0 0.0
    %123 = vmatprep.subr.mxu0 0.0
    %124 = vmatpush1.msra.mxu0 0.0
    %125 = vmatprep.subr.mxu0 0.0
    %126 = vmatpush1.msra.mxu0 0.0
    %127 = vmatprep.subr.mxu0 0.0
    %128 = vmatpush1.msra.mxu0 0.0
    %129 = vmatprep.subr.mxu0 0.0
    %130 = vmatpush1.msra.mxu0 0.0
    %131 = vmatprep.subr.mxu0 %v86
    %132 = vmatpush1.msra.mxu0 %v85
    %133 = vmatprep.subr.mxu0 %v84
    %134 = vmatpush1.msra.mxu0 %v83
    %135 = vmatprep.subr.mxu0 0.0
    %136 = vmatpush2.msra.mxu0 0.0
    %137 = vmatprep.subr.mxu0 0.0
    %138 = vmatpush2.msra.mxu0 0.0
    %139 = vmatprep.subr.mxu0 0.0
    %140 = vmatpush2.msra.mxu0 0.0
    %141 = vmatprep.subr.mxu0 0.0
    %142 = vmatpush2.msra.mxu0 0.0
    %143 = vmatprep.subr.mxu0 0.0
    %144 = vmatpush2.msra.mxu0 0.0
    %145 = vmatprep.subr.mxu0 0.0
    %146 = vmatpush2.msra.mxu0 0.0
    %147 = vmatprep.subr.mxu0 0.0
    %148 = vmatpush2.msra.mxu0 0.0
    %149 = vmatprep.subr.mxu0 0.0
    %150 = vmatpush2.msra.mxu0 0.0
    %151 = vmatprep.subr.mxu0 0.0
    %152 = vmatpush2.msra.mxu0 0.0
    %153 = vmatprep.subr.mxu0 0.0
    %154 = vmatpush2.msra.mxu0 0.0
    %155 = vmatprep.subr.mxu0 0.0
    %156 = vmatpush2.msra.mxu0 0.0
    %157 = vmatprep.subr.mxu0 0.0
    %158 = vmatpush2.msra.mxu0 0.0
    %159 = vmatprep.subr.mxu0 0.0
    %160 = vmatpush2.msra.mxu0 0.0
    %161 = vmatprep.subr.mxu0 0.0
    %162 = vmatpush2.msra.mxu0 0.0
    %163 = vmatprep.subr.mxu0 0.0
    %164 = vmatpush2.msra.mxu0 0.0
    %165 = vmatprep.subr.mxu0 0.0
    %166 = vmatpush2.msra.mxu0 0.0
    %167 = vmatprep.mubr.f32.mxu0 0.0
    %168 = vmatmul.mubr.f32.gmra.mxu0 %v101
    %v169 = vpop.f32.mrf.mxu0
    %v170 = vadd.f32 %v92, %v169
    %v171 = vpop.f32.mrf.mxu0
    %v172 = vadd.f32 %v96, %v171
    %173 = vdwg.mxu0
    %v174 = vmax.f32 %v170, 0.0
    %v175 = vmax.f32 %v172, 0.0
    %v176 = vpack.c.bf16 %v174, %v174
    %v177 = vpack.c.bf16 %v175, %v175
    %v178 = vld [vmem:[#allocation6] sm:$0xf]
    %v179 = vld [vmem:[#allocation6 + $0x4] sm:$0xf]
    %v180 = vld [vmem:[#allocation6 + $0x8] sm:$0xf]
    %v181 = vld [vmem:[#allocation6 + $0xc] sm:$0xf]
    %v182 = vld [vmem:[#allocation6 + $0x10] sm:$0xf]
    %v183 = vld [vmem:[#allocation6 + $0x14] sm:$0xf]
    %v184 = vld [vmem:[#allocation6 + $0x18] sm:$0xf]
    %v185 = vld [vmem:[#allocation6 + $0x1c] sm:$0xf]
    %v186 = vld [vmem:[#allocation6 + $0x20] sm:$0xf]
    %v187 = vld [vmem:[#allocation6 + $0x24] sm:$0xf]
    %v188 = vld [vmem:[#allocation6 + $0x28] sm:$0xf]
    %v189 = vld [vmem:[#allocation6 + $0x2c] sm:$0xf]
    %v190 = vld [vmem:[#allocation6 + $0x30] sm:$0xf]
    %v191 = vld [vmem:[#allocation6 + $0x34] sm:$0xf]
    %v192 = vld [vmem:[#allocation6 + $0x38] sm:$0xf]
    %v193 = vld [vmem:[#allocation6 + $0x3c] sm:$0xf]
    %v194 = vld [vmem:[#allocation6 + $0x40] sm:$0xf]
    %v195 = vld [vmem:[#allocation6 + $0x44] sm:$0xf]
    %v196 = vld [vmem:[#allocation6 + $0x48] sm:$0xf]
    %v197 = vld [vmem:[#allocation6 + $0x4c] sm:$0xf]
    %v198 = vld [vmem:[#allocation6 + $0x50] sm:$0xf]
    %v199 = vld [vmem:[#allocation6 + $0x54] sm:$0xf]
    %v200 = vld [vmem:[#allocation6 + $0x58] sm:$0xf]
    %v201 = vld [vmem:[#allocation6 + $0x5c] sm:$0xf]
    %v202 = vld [vmem:[#allocation6 + $0x60] sm:$0xf]
    %v203 = vld [vmem:[#allocation6 + $0x64] sm:$0xf]
    %v204 = vld [vmem:[#allocation6 + $0x68] sm:$0xf]
    %v205 = vld [vmem:[#allocation6 + $0x6c] sm:$0xf]
    %v206 = vld [vmem:[#allocation6 + $0x70] sm:$0xf]
    %v207 = vld [vmem:[#allocation6 + $0x74] sm:$0xf]
    %v208 = vld [vmem:[#allocation6 + $0x78] sm:$0xf]
    %v209 = vld [vmem:[#allocation6 + $0x7c] sm:$0xf]
    %v210 = vld [vmem:[%s4] sm:$0x1]
    %v212 = vlaneseq
    %v213 = vshrl.u32 %v212, 7
    %v214 = vsub.s32 0, %v213
    %v215 = vrot.slane %v210, %v214
    %v249 = vunpack.c.l.b16 %v178
    %v250 = vunpack.c.l.b16 %v179
    %v251 = vunpack.c.l.b16 %v180
    %v252 = vunpack.c.l.b16 %v181
    %v253 = vunpack.c.l.b16 %v182
    %v254 = vunpack.c.l.b16 %v183
    %v255 = vunpack.c.l.b16 %v184
    %v256 = vunpack.c.l.b16 %v185
    %v257 = vunpack.c.l.b16 %v186
    %v258 = vunpack.c.l.b16 %v187
    %v259 = vunpack.c.l.b16 %v188
    %v260 = vunpack.c.l.b16 %v189
    %v261 = vunpack.c.l.b16 %v190
    %v262 = vunpack.c.l.b16 %v191
    %v263 = vunpack.c.l.b16 %v192
    %v264 = vunpack.c.l.b16 %v193
    %v265 = vunpack.c.l.b16 %v194
    %v266 = vunpack.c.l.b16 %v195
    %v267 = vunpack.c.l.b16 %v196
    %v268 = vunpack.c.l.b16 %v197
    %v269 = vunpack.c.l.b16 %v198
    %v270 = vunpack.c.l.b16 %v199
    %v271 = vunpack.c.l.b16 %v200
    %v272 = vunpack.c.l.b16 %v201
    %v273 = vunpack.c.l.b16 %v202
    %v274 = vunpack.c.l.b16 %v203
    %v275 = vunpack.c.l.b16 %v204
    %v276 = vunpack.c.l.b16 %v205
    %v277 = vunpack.c.l.b16 %v206
    %v278 = vunpack.c.l.b16 %v207
    %v279 = vunpack.c.l.b16 %v208
    %v280 = vunpack.c.l.b16 %v209
    %v281 = vpack.c.b16 %v250, %v249
    %v282 = vpack.c.b16 %v252, %v251
    %v283 = vpack.c.b16 %v254, %v253
    %v284 = vpack.c.b16 %v256, %v255
    %v285 = vpack.c.b16 %v258, %v257
    %v286 = vpack.c.b16 %v260, %v259
    %v287 = vpack.c.b16 %v262, %v261
    %v288 = vpack.c.b16 %v264, %v263
    %v289 = vpack.c.b16 %v266, %v265
    %v290 = vpack.c.b16 %v268, %v267
    %v291 = vpack.c.b16 %v270, %v269
    %v292 = vpack.c.b16 %v272, %v271
    %v293 = vpack.c.b16 %v274, %v273
    %v294 = vpack.c.b16 %v276, %v275
    %v295 = vpack.c.b16 %v278, %v277
    %v296 = vpack.c.b16 %v280, %v279
    %313 = vmatprep.subr.bf16.mxu0 0
    %314 = vmatpush1.bf16.msra.mxu0 %v288
    %315 = vmatprep.subr.bf16.mxu0 0
    %316 = vmatpush1.bf16.msra.mxu0 %v287
    %317 = vmatprep.subr.bf16.mxu0 0
    %318 = vmatpush1.bf16.msra.mxu0 %v286
    %319 = vmatprep.subr.bf16.mxu0 0
    %320 = vmatpush1.bf16.msra.mxu0 %v285
    %321 = vmatprep.subr.bf16.mxu0 0
    %322 = vmatpush1.bf16.msra.mxu0 %v284
    %323 = vmatprep.subr.bf16.mxu0 0
    %324 = vmatpush1.bf16.msra.mxu0 %v283
    %325 = vmatprep.subr.bf16.mxu0 0
    %326 = vmatpush1.bf16.msra.mxu0 %v282
    %327 = vmatprep.subr.bf16.mxu0 0
    %328 = vmatpush1.bf16.msra.mxu0 %v281
    %329 = vmatprep.subr.bf16.mxu0 0
    %330 = vmatpush2.bf16.msra.mxu0 %v296
    %331 = vmatprep.subr.bf16.mxu0 0
    %332 = vmatpush2.bf16.msra.mxu0 %v295
    %333 = vmatprep.subr.bf16.mxu0 0
    %334 = vmatpush2.bf16.msra.mxu0 %v294
    %335 = vmatprep.subr.bf16.mxu0 0
    %336 = vmatpush2.bf16.msra.mxu0 %v293
    %337 = vmatprep.subr.bf16.mxu0 0
    %338 = vmatpush2.bf16.msra.mxu0 %v292
    %339 = vmatprep.subr.bf16.mxu0 0
    %340 = vmatpush2.bf16.msra.mxu0 %v291
    %341 = vmatprep.subr.bf16.mxu0 0
    %342 = vmatpush2.bf16.msra.mxu0 %v290
    %343 = vmatprep.subr.bf16.mxu0 0
    %344 = vmatpush2.bf16.msra.mxu0 %v289
    %345 = vmatprep.mubr.bf16.mxu0 %v177
    %346 = vmatmul.mubr.bf16.gmra.mxu0 %v176
    %v347 = vpop.f32.mrf.mxu0
    %v348 = vadd.f32 %v215, %v347
    %v349 = vpop.f32.mrf.mxu0
    %v350 = vpop.f32.mrf.mxu0
    %v351 = vpop.f32.mrf.mxu0
    %352 = vdwg.mxu0
    %v353 = vmax.f32 %v348, 0.0
    %v354 = vpack.c.bf16 %v353, %v353
    %v355 = vld [vmem:[#allocation7] sm:$0xf]
    %v356 = vld [vmem:[#allocation7 + $0x4] sm:$0xf]
    %v357 = vld [vmem:[#allocation7 + $0x8] sm:$0xf]
    %v358 = vld [vmem:[#allocation7 + $0xc] sm:$0xf]
    %v359 = vld [vmem:[#allocation7 + $0x10] sm:$0xf]
    %v360 = vld [vmem:[#allocation7 + $0x14] sm:$0xf]
    %v361 = vld [vmem:[#allocation7 + $0x18] sm:$0xf]
    %v362 = vld [vmem:[#allocation7 + $0x1c] sm:$0xf]
    %v363 = vld [vmem:[#allocation7 + $0x20] sm:$0xf]
    %v364 = vld [vmem:[#allocation7 + $0x24] sm:$0xf]
    %v365 = vld [vmem:[#allocation7 + $0x28] sm:$0xf]
    %v366 = vld [vmem:[#allocation7 + $0x2c] sm:$0xf]
    %v367 = vld [vmem:[#allocation7 + $0x30] sm:$0xf]
    %v368 = vld [vmem:[#allocation7 + $0x34] sm:$0xf]
    %v369 = vld [vmem:[#allocation7 + $0x38] sm:$0xf]
    %v370 = vld [vmem:[#allocation7 + $0x3c] sm:$0xf]
    %v371 = vld [vmem:[%s6] sm:$0x1]
    %v373 = vlaneseq
    %v374 = vshrl.u32 %v373, 7
    %v375 = vsub.s32 0, %v374
    %v376 = vrot.slane %v371, %v375
    %v394 = vunpack.c.l.b16 %v355
    %v395 = vunpack.c.l.b16 %v356
    %v396 = vunpack.c.l.b16 %v357
    %v397 = vunpack.c.l.b16 %v358
    %v398 = vunpack.c.l.b16 %v359
    %v399 = vunpack.c.l.b16 %v360
    %v400 = vunpack.c.l.b16 %v361
    %v401 = vunpack.c.l.b16 %v362
    %v402 = vunpack.c.l.b16 %v363
    %v403 = vunpack.c.l.b16 %v364
    %v404 = vunpack.c.l.b16 %v365
    %v405 = vunpack.c.l.b16 %v366
    %v406 = vunpack.c.l.b16 %v367
    %v407 = vunpack.c.l.b16 %v368
    %v408 = vunpack.c.l.b16 %v369
    %v409 = vunpack.c.l.b16 %v370
    %v410 = vpack.c.b16 %v395, %v394
    %v411 = vpack.c.b16 %v397, %v396
    %v412 = vpack.c.b16 %v399, %v398
    %v413 = vpack.c.b16 %v401, %v400
    %v414 = vpack.c.b16 %v403, %v402
    %v415 = vpack.c.b16 %v405, %v404
    %v416 = vpack.c.b16 %v407, %v406
    %v417 = vpack.c.b16 %v409, %v408
    %426 = vmatprep.subr.bf16.mxu0 0
    %427 = vmatpush1.bf16.msra.mxu0 %v417
    %428 = vmatprep.subr.bf16.mxu0 0
    %429 = vmatpush1.bf16.msra.mxu0 %v416
    %430 = vmatprep.subr.bf16.mxu0 0
    %431 = vmatpush1.bf16.msra.mxu0 %v415
    %432 = vmatprep.subr.bf16.mxu0 0
    %433 = vmatpush1.bf16.msra.mxu0 %v414
    %434 = vmatprep.subr.bf16.mxu0 0
    %435 = vmatpush1.bf16.msra.mxu0 %v413
    %436 = vmatprep.subr.bf16.mxu0 0
    %437 = vmatpush1.bf16.msra.mxu0 %v412
    %438 = vmatprep.subr.bf16.mxu0 0
    %439 = vmatpush1.bf16.msra.mxu0 %v411
    %440 = vmatprep.subr.bf16.mxu0 0
    %441 = vmatpush1.bf16.msra.mxu0 %v410
    %442 = vmatprep.subr.bf16.mxu0 0
    %443 = vmatpush2.bf16.msra.mxu0 0
    %444 = vmatprep.subr.bf16.mxu0 0
    %445 = vmatpush2.bf16.msra.mxu0 0
    %446 = vmatprep.subr.bf16.mxu0 0
    %447 = vmatpush2.bf16.msra.mxu0 0
    %448 = vmatprep.subr.bf16.mxu0 0
    %449 = vmatpush2.bf16.msra.mxu0 0
    %450 = vmatprep.subr.bf16.mxu0 0
    %451 = vmatpush2.bf16.msra.mxu0 0
    %452 = vmatprep.subr.bf16.mxu0 0
    %453 = vmatpush2.bf16.msra.mxu0 0
    %454 = vmatprep.subr.bf16.mxu0 0
    %455 = vmatpush2.bf16.msra.mxu0 0
    %456 = vmatprep.subr.bf16.mxu0 0
    %457 = vmatpush2.bf16.msra.mxu0 0
    %458 = vmatprep.mubr.bf16.mxu0 0
    %459 = vmatmul.mubr.bf16.gmra.mxu0 %v354
    %v460 = vpop.f32.mrf.mxu0
    %v461 = vadd.f32 %v376, %v460
    %v462 = vpop.f32.mrf.mxu0
    %v463 = vpop.f32.mrf.mxu0
    %v464 = vpop.f32.mrf.mxu0
    %465 = vdwg.mxu0
    %v466 = vtanh.pop %v461
    %v467 = vpack.c.bf16 %v466, %v466
    %468 = vst [vmem:[%s7] sm:$0xf] %v467
    // Predicated region
    $region46: #{_actor_forward_impl.1} parent=1 // pred_check
      _
    $region47: #{_actor_forward_impl.1} parent=1 // pred_check_branch
      %470 = sbr.rel (0) target = $region49
    $region48: #{_actor_forward_impl.1} parent=1 // pred_region
      _
    $region49: #{_actor_forward_impl.1} parent=1 // pred_fallthru
      _
    // Predicated region
    $region50: #{_actor_forward_impl.1} parent=1 // pred_check
      _
    $region51: #{_actor_forward_impl.1} parent=1 // pred_check_branch
      %472 = sbr.rel (0) target = $region53
    $region52: #{_actor_forward_impl.1} parent=1 // pred_region
      _
    $region53: #{_actor_forward_impl.1} parent=1 // pred_fallthru
      _
    %473 = vsyncpa [#allocation3], 1
    %474 = vsyncpa [#allocation5], 1
    %475 = vsyncpa [#allocation8], 1

</llo_original>
